<compile_context>
chip_gen: v7x
topology: tpu7x:2x2x1
jax: 0.10.0
libtpu: 0.0.40
codegen_flags: <defaults>
</compile_context>

<pallas_src>
import jax
import jax.numpy as jnp
from jax.experimental import pallas as pl
from jax.experimental.pallas import tpu as pltpu

NEG_SLOPE = 0.01                     # nn.LeakyReLU default
BN_EPS = 1e-5                        # nn.BatchNorm1d default
_VMEM_LIMIT = 32 * 1024 * 1024       # safe scoped-VMEM limit on v5e / v6e / v7x
_VMEM_BUDGET = int(0.75 * _VMEM_LIMIT)


def _round_up(x, m):
    return (x + m - 1) // m * m


# ----------------------------------------------------------------------------- kernels

def _leaky_dot(x_ref, wT_ref, bT_ref):
    """(H, tile_b) = LeakyReLU(W_eff^T @ x_tile^T + b_eff^T); batch on lanes."""
    ht = jax.lax.dot_general(
        wT_ref[...], x_ref[...], (((1,), (1,)), ((), ())),
        preferred_element_type=jnp.float32) + bT_ref[...]
    return jnp.where(ht > 0, ht, NEG_SLOPE * ht)


def _final_head(ht, w2s, bc, num_classes):
    """(C, tile_b) = (W2 * invstd)^T @ ht + folded bias."""
    if num_classes == 1:
        # An N=1 MXU matmul is pure waste: VPU multiply + sublane reduce instead.
        return jnp.sum(w2s * ht, axis=0, keepdims=True) + bc
    return jax.lax.dot_general(
        w2s, ht, (((0,), (0,)), ((), ())),
        preferred_element_type=jnp.float32) + bc


def _make_single_pass_kernel(batch, num_classes):
    """Whole batch in one tile: matmul + BN stats + normalize + head in one step."""
    inv_b = 1.0 / float(batch)

    def kernel(x_ref, wT_ref, bT_ref, w2_ref, b2T_ref, out_ref):
        ht = _leaky_dot(x_ref, wT_ref, bT_ref)                       # (H, B)
        mean = jnp.sum(ht, axis=1, keepdims=True) * inv_b            # (H, 1)
        var = jnp.maximum(jnp.sum(ht * ht, axis=1, keepdims=True) * inv_b
                          - mean * mean, 0.0)
        invstd = jax.lax.rsqrt(var + BN_EPS)
        # Fold BN into the head: out = (w2*invstd)^T ht + (b2 - (w2*invstd)^T mean)
        w2s = w2_ref[...] * invstd                                   # (H, C)
        if num_classes == 1:
            bc = b2T_ref[...] - jnp.sum(w2s * mean, axis=0, keepdims=True)
        else:
            bc = b2T_ref[...] - jax.lax.dot_general(
                w2s, mean, (((0,), (0,)), ((), ())),
                preferred_element_type=jnp.float32)
        out_ref[...] = _final_head(ht, w2s, bc, num_classes).astype(out_ref.dtype)

    return kernel


def _make_two_pass_kernel(batch_real, tile_b, num_classes, stash, masked):
    """grid=(pass, batch_tile); pass 0 = full-batch BN stats, pass 1 = output."""
    inv_b = 1.0 / float(batch_real)

    def kernel(x_ref, wT_ref, bT_ref, w2_ref, b2T_ref, out_ref, *scratch):
        if stash:
            sum_ref, ssq_ref, w2s_ref, bc_ref, hst_ref = scratch
        else:
            sum_ref, ssq_ref, w2s_ref, bc_ref = scratch
        p = pl.program_id(0)          # 0 = statistics pass, 1 = normalize/output pass
        j = pl.program_id(1)          # batch tile

        if not stash:
            # Recompute variant: the pre-BN activations are rebuilt in both passes
            # instead of round-tripping them through HBM.
            # TODO(synk): when 2*H < D, spilling ht to an HBM scratch beats recompute.
            ht_live = _leaky_dot(x_ref, wT_ref, bT_ref)

        @pl.when(jnp.logical_and(p == 0, j == 0))
        def _():
            sum_ref[...] = jnp.zeros_like(sum_ref)
            ssq_ref[...] = jnp.zeros_like(ssq_ref)

        @pl.when(p == 0)
        def _():
            ht = _leaky_dot(x_ref, wT_ref, bT_ref) if stash else ht_live
            if stash:
                hst_ref[j] = ht                   # resident (nbt, H, tile_b) stash
            if masked:
                # Padded lane columns would contribute LeakyReLU(b_eff) != 0.
                col = jax.lax.broadcasted_iota(jnp.int32, (1, tile_b), 1)
                ht = jnp.where(col + j * tile_b < batch_real, ht, 0.0)
            sum_ref[...] += jnp.sum(ht, axis=1, keepdims=True)
            ssq_ref[...] += jnp.sum(ht * ht, axis=1, keepdims=True)

        @pl.when(jnp.logical_and(p == 1, j == 0))
        def _():
            # Fold the full-batch BN statistics into the final weights ONCE.
            mean = sum_ref[...] * inv_b
            var = jnp.maximum(ssq_ref[...] * inv_b - mean * mean, 0.0)
            invstd = jax.lax.rsqrt(var + BN_EPS)
            w2s = w2_ref[...] * invstd
            w2s_ref[...] = w2s
            if num_classes == 1:
                bc_ref[...] = b2T_ref[...] - jnp.sum(w2s * mean, axis=0, keepdims=True)
            else:
                bc_ref[...] = b2T_ref[...] - jax.lax.dot_general(
                    w2s, mean, (((0,), (0,)), ((), ())),
                    preferred_element_type=jnp.float32)

        @pl.when(p == 1)
        def _():
            ht = hst_ref[j] if stash else ht_live
            out_ref[...] = _final_head(ht, w2s_ref[...], bc_ref[...],
                                       num_classes).astype(out_ref.dtype)

    return kernel


# ----------------------------------------------------------------------------- planning

def _plan_two_pass(B, D, H, C, bx, budget):
    """Pick (tile_b, padded_batch, masked, stash) for the two-pass kernel."""
    # Weights/biases are double-buffered by the default pipeline.
    # TODO(synk): pipeline_mode=pl.Buffered(1) on the constant-index weight specs
    # would halve their resident footprint (matters most on v7x's 64 MiB VMEM).
    fixed = (2 * H * D * bx                       # folded W1
             + 2 * 4 * (H + H * C + C)            # b1, W2, b2
             + 4 * (2 * H + H * C + C))           # sum / sumsq / w2s / bc scratch
    per_col = 2 * D * bx + 2 * C * 4              # dbl-buffered x + out, per batch column

    def pick(reserved):
        avail = budget - fixed - reserved
        if avail < per_col * 128:
            return None
        max_tile = (avail // per_col) // 128 * 128
        best = None
        for t in range(128, min(max_tile, B) + 1, 128):
            if B % t == 0:
                best = t
        if best is not None:
            return best, B, False
        tile_b = min(max_tile, _round_up(B, 128))
        return tile_b, _round_up(B, tile_b), True

    # Prefer stashing the pass-0 activations in VMEM: pass 1 then skips both the
    # second X read and the second matmul.
    plan = pick(H * _round_up(B, 128) * 4)
    if plan is not None and fixed + per_col * plan[0] + H * plan[1] * 4 <= budget:
        return plan + (True,)
    plan = pick(0)
    if plan is None:
        # Degenerate (huge D): smallest legal tile, recompute variant.
        return 128, _round_up(B, 128), B % 128 != 0, False
    return plan + (False,)


# ----------------------------------------------------------------------------- wrapper

def per_sub_selfsup_forward(data, params, nodes_per_freq, modelindx,
                            *, use_bf16_matmul=False, _force_plan=None):
    """Pallas implementation of Per_Sub_selfsup.forward (training-mode BatchNorm).

    Set use_bf16_matmul=True on v6e/v7x for bf16 MXU inputs (f32 accumulation and
    an f32 BN/epilogue are kept).
    """
    active = [i for i in range(len(nodes_per_freq)) if nodes_per_freq[i] != 0]

    # --- host-side algebraic folding of the per-frequency heads into firstLinear ---
    # TODO(synk): freqmodels come from an external `trained_model` whose architecture
    # is not given; they are modeled as per-frequency Linear heads.
    offsets = [0]
    for i in active:
        offsets.append(offsets[-1] + nodes_per_freq[i])
    w1, b1 = params["w1"], params["b1"]
    w_eff_blocks = []
    b_eff = b1
    for k, i in enumerate(active):
        wf, bf = params["freq"][modelindx[i]]
        w1_f = w1[offsets[k]:offsets[k + 1], :]
        w_eff_blocks.append(wf @ w1_f)              # (D_i, H)
        b_eff = b_eff + bf @ w1_f                   # (1, H)
    w_eff = jnp.concatenate(w_eff_blocks, axis=0)   # (D_total, H)

    # --- fold the BatchNorm affine (gamma, beta) into finalLinear ---
    w2f = params["gamma"].reshape(-1, 1) * params["w2"]     # (H, C)
    b2f = params["beta"] @ params["w2"] + params["b2"]      # (1, C)

    # --- pack the per-frequency inputs; NO transpose of X (batch stays leading) ---
    # TODO(synk): the concat is still one X read+write in XLA; passing per-frequency
    # operands with their own BlockSpecs would remove it entirely.
    x = jnp.concatenate([data[i] for i in active], axis=-1)  # (B, D_total)
    B, D = x.shape
    H = w_eff.shape[1]
    C = w2f.shape[1]

    wT = w_eff.T          # (H, D)  weights only -> tiny one-time transpose
    bT = b_eff.T          # (H, 1)
    b2T = b2f.T           # (C, 1)
    if use_bf16_matmul:
        x = x.astype(jnp.bfloat16)
        wT = wT.astype(jnp.bfloat16)
    bx = 2 if use_bf16_matmul else 4

    single_bytes = (2 * B * D * bx + 2 * H * D * bx + 2 * 4 * (H + H * C + C)
                    + 2 * C * B * 4 + 2 * H * B * 4)

    if _force_plan is None and single_bytes <= _VMEM_BUDGET:
        # Whole batch fits one tile: single pass, single grid step.
        out_t = pl.pallas_call(
            _make_single_pass_kernel(B, C),
            out_shape=jax.ShapeDtypeStruct((C, B), jnp.float32),
            grid_spec=pltpu.PrefetchScalarGridSpec(
                num_scalar_prefetch=0,
                grid=(1,),
                in_specs=[
                    pl.BlockSpec((B, D), lambda i: (0, 0)),
                    pl.BlockSpec((H, D), lambda i: (0, 0)),
                    pl.BlockSpec((H, 1), lambda i: (0, 0)),
                    pl.BlockSpec((H, C), lambda i: (0, 0)),
                    pl.BlockSpec((C, 1), lambda i: (0, 0)),
                ],
                out_specs=pl.BlockSpec((C, B), lambda i: (0, 0)),
            ),
            compiler_params=pltpu.CompilerParams(
                dimension_semantics=("arbitrary",),
                vmem_limit_bytes=_VMEM_LIMIT),
        )(x, wT, bT, w2f, b2T)
    else:
        plan = _force_plan if _force_plan is not None else _plan_two_pass(
            B, D, H, C, bx, _VMEM_BUDGET)
        tile_b, b_pad, masked, stash = plan
        if b_pad != B:
            x = jnp.pad(x, ((0, b_pad - B), (0, 0)))
        nbt = b_pad // tile_b

        scratch = [pltpu.VMEM((H, 1), jnp.float32),     # BN sum
                   pltpu.VMEM((H, 1), jnp.float32),     # BN sum of squares
                   pltpu.VMEM((H, C), jnp.float32),     # W2 * invstd
                   pltpu.VMEM((C, 1), jnp.float32)]     # folded output bias
        if stash:
            scratch.append(pltpu.VMEM((nbt, H, tile_b), jnp.float32))
            x_map = lambda p, j: (j * (1 - p), 0)       # pass 1 pinned -> no 2nd X DMA
        else:
            x_map = lambda p, j: (j, 0)

        out_t = pl.pallas_call(
            _make_two_pass_kernel(B, tile_b, C, stash, masked),
            out_shape=jax.ShapeDtypeStruct((C, b_pad), jnp.float32),
            grid_spec=pltpu.PrefetchScalarGridSpec(
                num_scalar_prefetch=0,
                grid=(2, nbt),                           # (pass, batch tile)
                in_specs=[
                    pl.BlockSpec((tile_b, D), x_map),            # activations
                    pl.BlockSpec((H, D), lambda p, j: (0, 0)),   # folded W1 (resident)
                    pl.BlockSpec((H, 1), lambda p, j: (0, 0)),   # folded b1
                    pl.BlockSpec((H, C), lambda p, j: (0, 0)),   # folded W2
                    pl.BlockSpec((C, 1), lambda p, j: (0, 0)),   # folded b2
                ],
                # Pass 0 pinned to block 0 and never written -> no pass-0 writebacks.
                out_specs=pl.BlockSpec((C, tile_b), lambda p, j: (0, j * p)),
                scratch_shapes=scratch,
            ),
            compiler_params=pltpu.CompilerParams(
                # Both axes carry the BN-statistics accumulator dependency.
                # TODO(synk): on v7x split the batch axis across the 2 TensorCores and
                # combine partial BN stats via VMEM_SHARED/CMEM + core_barrier.
                dimension_semantics=("arbitrary", "arbitrary"),
                vmem_limit_bytes=_VMEM_LIMIT),
        )(x, wT, bT, w2f, b2T)
        out_t = out_t[:, :B]

    # torch .squeeze(-1): only removes the trailing dim when it is size 1
    return out_t[0] if C == 1 else out_t.T


# ----------------------------------------------------------------------------- reference

def reference_forward(data, params, nodes_per_freq, modelindx):
    """Pure-jnp reference matching the torch module semantics."""
    outs = []
    for i in range(len(nodes_per_freq)):
        if nodes_per_freq[i] != 0:
            w, b = params["freq"][modelindx[i]]
            outs.append(data[i] @ w + b)
    cont = jnp.concatenate(outs, -1)
    h = cont @ params["w1"] + params["b1"]
    h = jnp.where(h > 0, h, NEG_SLOPE * h)
    mean = h.mean(0, keepdims=True)
    var = ((h - mean) ** 2).mean(0, keepdims=True)
    h = (h - mean) / jnp.sqrt(var + BN_EPS)
    h = h * params["gamma"] + params["beta"]
    o = h @ params["w2"] + params["b2"]
    return jnp.squeeze(o, -1) if o.shape[-1] == 1 else o


def make_params(key, nodes_per_freq, modelindx, in_dims, hidden, num_classes):
    """Deterministic synthetic parameters (shapes implied by the module __init__)."""
    params = {"freq": {}}
    keys = jax.random.split(key, 2 * len(nodes_per_freq) + 6)
    k_iter = iter(keys)
    for i in range(len(nodes_per_freq)):
        if nodes_per_freq[i] == 0:
            continue
        m = modelindx[i]
        w = 0.1 * jax.random.normal(next(k_iter), (in_dims[i], nodes_per_freq[i]),
                                    jnp.float32)
        b = 0.1 * jax.random.normal(next(k_iter), (1, nodes_per_freq[i]), jnp.float32)
        params["freq"][m] = (w, b)
    total_nodes = sum(nodes_per_freq)
    params["w1"] = 0.1 * jax.random.normal(next(k_iter), (total_nodes, hidden),
                                           jnp.float32)
    params["b1"] = 0.1 * jax.random.normal(next(k_iter), (1, hidden), jnp.float32)
    params["gamma"] = jnp.ones((1, hidden), jnp.float32)      # BatchNorm1d init
    params["beta"] = jnp.zeros((1, hidden), jnp.float32)
    params["w2"] = 0.1 * jax.random.normal(next(k_iter), (hidden, num_classes),
                                           jnp.float32)
    params["b2"] = 0.1 * jax.random.normal(next(k_iter), (1, num_classes), jnp.float32)
    return params


if __name__ == "__main__":
    key = jax.random.PRNGKey(0)

    nodes_per_freq = [8, 0, 8, 8]     # freq 1 has 0 nodes -> filtered out, as in torch
    modelindx = [0, 1, 2, 3]
    in_dims = [16, 16, 16, 16]        # per-frequency input feature sizes
    hidden = 32                       # nodes_before_last_layer
    num_classes = 1                   # NumClasses (squeeze(-1) removes it)

    kp, kd = jax.random.split(key)
    params = make_params(kp, nodes_per_freq, modelindx, in_dims, hidden, num_classes)

    def make_data(k, batch):
        dkeys = jax.random.split(k, len(nodes_per_freq))
        return [jax.random.normal(dkeys[i], (batch, in_dims[i]), jnp.float32)
                for i in range(len(nodes_per_freq))]

    # 1) small batch -> fused single-pass kernel (f32)
    B = 8
    data = make_data(kd, B)
    out = jax.block_until_ready(
        per_sub_selfsup_forward(data, params, nodes_per_freq, modelindx))
    ref = reference_forward(data, params, nodes_per_freq, modelindx)
    assert out.shape == ref.shape == (B,)
    assert float(jnp.max(jnp.abs(out - ref))) < 1e-3, "f32 single-pass mismatch"

    # 2) bf16 MXU inputs (v6e/v7x fast path), f32 accumulation / epilogue
    out_bf16 = jax.block_until_ready(per_sub_selfsup_forward(
        data, params, nodes_per_freq, modelindx, use_bf16_matmul=True))
    assert float(jnp.max(jnp.abs(out_bf16 - ref))) < 5e-2, "bf16 path mismatch"

    # 3) force the tiled two-pass path (VMEM-stashed activations, no recompute)
    B2 = 256
    data2 = make_data(jax.random.fold_in(kd, 1), B2)
    out2 = jax.block_until_ready(per_sub_selfsup_forward(
        data2, params, nodes_per_freq, modelindx, _force_plan=(128, 256, False, True)))
    ref2 = reference_forward(data2, params, nodes_per_freq, modelindx)
    assert out2.shape == (B2,)
    assert float(jnp.max(jnp.abs(out2 - ref2))) < 2e-3, "two-pass stash mismatch"

    # 4) force the padded/masked recompute path (batch not a multiple of 128)
    B3 = 200
    data3 = make_data(jax.random.fold_in(kd, 2), B3)
    out3 = jax.block_until_ready(per_sub_selfsup_forward(
        data3, params, nodes_per_freq, modelindx, _force_plan=(128, 256, True, False)))
    ref3 = reference_forward(data3, params, nodes_per_freq, modelindx)
    assert out3.shape == (B3,)
    assert float(jnp.max(jnp.abs(out3 - ref3))) < 2e-3, "masked recompute mismatch"

    print("KERNEL_OK")
</pallas_src>

<mosaic_0001>
module attributes {stable_mosaic.version = 11 : i64} {
  func.func @kernel(%arg0: i32, %arg1: memref<8x48xf32, #tpu.memory_space<vmem>>, %arg2: memref<32x48xf32, #tpu.memory_space<vmem>>, %arg3: memref<32x1xf32, #tpu.memory_space<vmem>>, %arg4: memref<32x1xf32, #tpu.memory_space<vmem>>, %arg5: memref<1x1xf32, #tpu.memory_space<vmem>>, %arg6: memref<1x8xf32, #tpu.memory_space<vmem>>) attributes {dimension_semantics = [#tpu.dimension_semantics<arbitrary>], iteration_bounds = array<i64: 1>, scalar_prefetch = 0 : i64, scratch_operands = 0 : i64, tpu.core_type = #tpu.core_type<tc>, window_params = [{pipeline_mode = #tpu.pipeline_mode<synchronous>, transform_indices = @transform_0, window_bounds = array<i64: 8, 48>}, {pipeline_mode = #tpu.pipeline_mode<synchronous>, transform_indices = @transform_1, window_bounds = array<i64: 32, 48>}, {pipeline_mode = #tpu.pipeline_mode<synchronous>, transform_indices = @transform_2, window_bounds = array<i64: 32, 1>}, {pipeline_mode = #tpu.pipeline_mode<synchronous>, transform_indices = @transform_3, window_bounds = array<i64: 32, 1>}, {pipeline_mode = #tpu.pipeline_mode<synchronous>, transform_indices = @transform_4, window_bounds = array<i64: 1, 1>}, {pipeline_mode = #tpu.pipeline_mode<synchronous>, transform_indices = @transform_5, window_bounds = array<i64: 1, 8>}]} {
    %c0 = arith.constant 0 : index
    %c0_0 = arith.constant 0 : index
    %0 = vector.load %arg2[%c0, %c0_0] : memref<32x48xf32, #tpu.memory_space<vmem>>, vector<32x48xf32>
    %c0_1 = arith.constant 0 : index
    %c0_2 = arith.constant 0 : index
    %1 = vector.load %arg1[%c0_1, %c0_2] : memref<8x48xf32, #tpu.memory_space<vmem>>, vector<8x48xf32>
    %cst = arith.constant dense<0.000000e+00> : vector<32x8xf32>
    %2 = tpu.matmul %0, %1, %cst {dimension_numbers = #tpu.dot_dimension_numbers<[1], [1], [0], [0], [0, 0, 1, 0], [], []>} : vector<32x48xf32>, vector<8x48xf32>, vector<32x8xf32> -> vector<32x8xf32>
    %c0_3 = arith.constant 0 : index
    %c0_4 = arith.constant 0 : index
    %3 = vector.load %arg3[%c0_3, %c0_4] : memref<32x1xf32, #tpu.memory_space<vmem>>, vector<32x1xf32>
    %4 = vector.broadcast %3 : vector<32x1xf32> to vector<32x8xf32>
    %5 = arith.addf %2, %4 : vector<32x8xf32>
    %cst_5 = arith.constant 0.000000e+00 : f32
    %6 = vector.broadcast %cst_5 : f32 to vector<32x8xf32>
    %7 = arith.cmpf ogt, %5, %6 : vector<32x8xf32>
    %cst_6 = arith.constant 0.00999999977 : f32
    %8 = vector.broadcast %cst_6 : f32 to vector<32x8xf32>
    %9 = arith.mulf %8, %5 : vector<32x8xf32>
    %10 = arith.select %7, %5, %9 : vector<32x8xi1>, vector<32x8xf32>
    %cst_7 = arith.constant dense<0.000000e+00> : vector<32xf32>
    %11 = vector.multi_reduction <add>, %10, %cst_7 [1] : vector<32x8xf32> to vector<32xf32>
    %12 = vector.shape_cast %11 : vector<32xf32> to vector<32x1xf32>
    %cst_8 = arith.constant 1.250000e-01 : f32
    %13 = vector.broadcast %cst_8 : f32 to vector<32x1xf32>
    %14 = arith.mulf %12, %13 : vector<32x1xf32>
    %15 = arith.mulf %10, %10 : vector<32x8xf32>
    %cst_9 = arith.constant dense<0.000000e+00> : vector<32xf32>
    %16 = vector.multi_reduction <add>, %15, %cst_9 [1] : vector<32x8xf32> to vector<32xf32>
    %17 = vector.shape_cast %16 : vector<32xf32> to vector<32x1xf32>
    %cst_10 = arith.constant 1.250000e-01 : f32
    %18 = vector.broadcast %cst_10 : f32 to vector<32x1xf32>
    %19 = arith.mulf %17, %18 : vector<32x1xf32>
    %20 = arith.mulf %14, %14 : vector<32x1xf32>
    %21 = arith.subf %19, %20 : vector<32x1xf32>
    %cst_11 = arith.constant 0.000000e+00 : f32
    %22 = vector.broadcast %cst_11 : f32 to vector<32x1xf32>
    %23 = arith.maximumf %21, %22 : vector<32x1xf32>
    %cst_12 = arith.constant 9.99999974E-6 : f32
    %24 = vector.broadcast %cst_12 : f32 to vector<32x1xf32>
    %25 = arith.addf %23, %24 : vector<32x1xf32>
    %26 = math.rsqrt %25 : vector<32x1xf32>
    %c0_13 = arith.constant 0 : index
    %c0_14 = arith.constant 0 : index
    %27 = vector.load %arg4[%c0_13, %c0_14] : memref<32x1xf32, #tpu.memory_space<vmem>>, vector<32x1xf32>
    %28 = arith.mulf %27, %26 : vector<32x1xf32>
    %c0_15 = arith.constant 0 : index
    %c0_16 = arith.constant 0 : index
    %29 = vector.load %arg5[%c0_15, %c0_16] : memref<1x1xf32, #tpu.memory_space<vmem>>, vector<1x1xf32>
    %30 = arith.mulf %28, %14 : vector<32x1xf32>
    %cst_17 = arith.constant dense<0.000000e+00> : vector<1xf32>
    %31 = vector.multi_reduction <add>, %30, %cst_17 [0] : vector<32x1xf32> to vector<1xf32>
    %32 = vector.shape_cast %31 : vector<1xf32> to vector<1x1xf32>
    %33 = arith.subf %29, %32 : vector<1x1xf32>
    %34 = vector.broadcast %28 : vector<32x1xf32> to vector<32x8xf32>
    %35 = arith.mulf %34, %10 : vector<32x8xf32>
    %cst_18 = arith.constant dense<0.000000e+00> : vector<8xf32>
    %36 = vector.multi_reduction <add>, %35, %cst_18 [0] : vector<32x8xf32> to vector<8xf32>
    %37 = vector.shape_cast %36 : vector<8xf32> to vector<1x8xf32>
    %38 = vector.broadcast %33 : vector<1x1xf32> to vector<1x8xf32>
    %39 = arith.addf %37, %38 : vector<1x8xf32>
    %c0_19 = arith.constant 0 : index
    %c0_20 = arith.constant 0 : index
    %40 = vector.load %arg6[%c0_19, %c0_20] : memref<1x8xf32, #tpu.memory_space<vmem>>, vector<1x8xf32>
    tpu.vector_store %arg6[%c0_19, %c0_20], %39 {strides = array<i32>} : memref<1x8xf32, #tpu.memory_space<vmem>>, vector<1x8xf32>,
    return
  }
  func.func @transform_0(%arg0: i32) -> (i32, i32) {
    %c0_i32 = arith.constant 0 : i32
    %c0_i32_0 = arith.constant 0 : i32
    %c0_i32_1 = arith.constant 0 : i32
    return %c0_i32, %c0_i32_0 : i32, i32
  }
  func.func @transform_1(%arg0: i32) -> (i32, i32) {
    %c0_i32 = arith.constant 0 : i32
    %c0_i32_0 = arith.constant 0 : i32
    %c0_i32_1 = arith.constant 0 : i32
    return %c0_i32, %c0_i32_0 : i32, i32
  }
  func.func @transform_2(%arg0: i32) -> (i32, i32) {
    %c0_i32 = arith.constant 0 : i32
    %c0_i32_0 = arith.constant 0 : i32
    %c0_i32_1 = arith.constant 0 : i32
    return %c0_i32, %c0_i32_0 : i32, i32
  }
  func.func @transform_3(%arg0: i32) -> (i32, i32) {
    %c0_i32 = arith.constant 0 : i32
    %c0_i32_0 = arith.constant 0 : i32
    %c0_i32_1 = arith.constant 0 : i32
    return %c0_i32, %c0_i32_0 : i32, i32
  }
  func.func @transform_4(%arg0: i32) -> (i32, i32) {
    %c0_i32 = arith.constant 0 : i32
    %c0_i32_0 = arith.constant 0 : i32
    %c0_i32_1 = arith.constant 0 : i32
    return %c0_i32, %c0_i32_0 : i32, i32
  }
  func.func @transform_5(%arg0: i32) -> (i32, i32) {
    %c0_i32 = arith.constant 0 : i32
    %c0_i32_0 = arith.constant 0 : i32
    %c0_i32_1 = arith.constant 0 : i32
    return %c0_i32, %c0_i32_0 : i32, i32
  }
}

</mosaic_0001>

<llo_original>
// kernel: tpu_custom_call.1
$region0: #{tpu_custom_call.1}
  #allocation0 [shape = 'u32[]', space=smem, size = 0x4, offset = 0x4, fixed_abs, tag = 'smem constant byte address 0x4 - core index']
  #allocation1 [shape = 'u32[144,128]{1,0:T(1,128)}', space=vmem, size = 0x12000, scoped, tag = 'internal scratch']
  #allocation2 [shape = 'f32[1,1]{1,0:T(1,128)S(1)}', space=vmem, size = 0x200, scoped, tag = 'scoped memory for tpu_custom_call.1']
  %s0 = inlined_call_operand.vmem [shape: f32[8,48], index: 0, kind: input, shape index: {}]
  %s1 = inlined_call_operand.vmem [shape: f32[32,48], index: 1, kind: input, shape index: {}]
  %s2 = inlined_call_operand.vmem [shape: f32[32,1], index: 2, kind: input, shape index: {}]
  %s3 = inlined_call_operand.vmem [shape: f32[32,1], index: 3, kind: input, shape index: {}]
  %s4 = inlined_call_operand.<no memory space> [shape: f32[1,1], index: 4, kind: input, shape index: {}]
  %s5 = inlined_call_operand.hbm [shape: f32[1,8], index: 5, kind: output, shape index: {}]
  %s6 = sld [smem:[#allocation0]]
  $region30: #{tpu_custom_call.1} parent=0
    _
  %s8 = ssub.s32 1, %s6
  %s9 = scalar_select 0, %s8, %s6
  %v10 = vstv %s4
  %11 = vst [vmem:[#allocation2] sm:$0x1] %v10
  $region1: #{tpu_custom_call.1} parent=0
    #allocation3 [shape = 'u8[512]{0}', space=vmem, size = 0x400, scoped, tag = 'output window, operand 0, single buffered']
    #allocation4 [shape = 's32[1]{0}', space=sflag, size = 0x4, scoped, tag = 'scoped memory for tpu_custom_call.1']
    %12 = vsyncpa [#allocation4], 0
    // Predicated region
    $region2: #{tpu_custom_call.1} parent=1 // pred_check
      _
    $region3: #{tpu_custom_call.1} parent=1 // pred_check_branch
      %14 = sbr.rel (0) target = $region5
    $region4: #{tpu_custom_call.1} parent=1 // pred_region
      _
    $region5: #{tpu_custom_call.1} parent=1 // pred_fallthru
      _
    // Predicated region
    $region6: #{tpu_custom_call.1} parent=1 // pred_check
      _
    $region7: #{tpu_custom_call.1} parent=1 // pred_check_branch
      %16 = sbr.rel (0) target = $region9
    $region8: #{tpu_custom_call.1} parent=1 // pred_region
      _
    $region9: #{tpu_custom_call.1} parent=1 // pred_fallthru
      _
    // Predicated region
    $region10: #{tpu_custom_call.1} parent=1 // pred_check
      _
    $region11: #{tpu_custom_call.1} parent=1 // pred_check_branch
      %18 = sbr.rel (0) target = $region13
    $region12: #{tpu_custom_call.1} parent=1 // pred_region
      _
    $region13: #{tpu_custom_call.1} parent=1 // pred_fallthru
      _
    // Predicated region
    $region14: #{tpu_custom_call.1} parent=1 // pred_check
      _
    $region15: #{tpu_custom_call.1} parent=1 // pred_check_branch
      %20 = sbr.rel (0) target = $region17
    $region16: #{tpu_custom_call.1} parent=1 // pred_region
      _
    $region17: #{tpu_custom_call.1} parent=1 // pred_fallthru
      _
    // Predicated region
    $region18: #{tpu_custom_call.1} parent=1 // pred_check
      _
    $region19: #{tpu_custom_call.1} parent=1 // pred_check_branch
      %22 = sbr.rel (0) target = $region21
    $region20: #{tpu_custom_call.1} parent=1 // pred_region
      _
    $region21: #{tpu_custom_call.1} parent=1 // pred_fallthru
      _
    %v23 = vld [vmem:[%s1] sm:$0xff]
    %v24 = vld [vmem:[%s1 + $0x8] sm:$0xff]
    %v25 = vld [vmem:[%s1 + $0x10] sm:$0xff]
    %v26 = vld [vmem:[%s1 + $0x18] sm:$0xff]
    %v27 = vld [vmem:[%s0] sm:$0xff]
    %v28 = vld [vmem:[%s2] sm:$0xff]
    %v29 = vld [vmem:[%s2 + $0x8] sm:$0xff]
    %v30 = vld [vmem:[%s2 + $0x10] sm:$0xff]
    %v31 = vld [vmem:[%s2 + $0x18] sm:$0xff]
    %33 = vset.pattern.permute.xlu0 0
    %34 = vperm.xlu0 %33, %v28
    %v35 = vpop.permute.xlu0 %34
    %38 = vset.pattern.permute.xlu0 0
    %39 = vperm.xlu0 %38, %v29
    %v40 = vpop.permute.xlu0 %39
    %43 = vset.pattern.permute.xlu0 0
    %44 = vperm.xlu0 %43, %v30
    %v45 = vpop.permute.xlu0 %44
    %48 = vset.pattern.permute.xlu0 0
    %49 = vperm.xlu0 %48, %v31
    %v50 = vpop.permute.xlu0 %49
    %vm52 = vcmask 392192
    %v54 = vsel %vm52, %v23, 0
    %v57 = vsel %vm52, %v24, 0
    %v60 = vsel %vm52, %v25, 0
    %v63 = vsel %vm52, %v26, 0
    %v66 = vsel %vm52, %v27, 0
    %68 = vmatprep.subr.mxu0 0.0
    %69 = vmatpush1.xpose.msra.mxu0 %v66
    %70 = vmatprep.subr.mxu0 0.0
    %71 = vmatpush1.xpose.msra.mxu0 0.0
    %72 = vmatprep.subr.mxu0 0.0
    %73 = vmatpush1.xpose.msra.mxu0 0.0
    %74 = vmatprep.subr.mxu0 0.0
    %75 = vmatpush1.xpose.msra.mxu0 0.0
    %76 = vmatprep.subr.mxu0 0.0
    %77 = vmatpush1.xpose.msra.mxu0 0.0
    %78 = vmatprep.subr.mxu0 0.0
    %79 = vmatpush1.xpose.msra.mxu0 0.0
    %80 = vmatprep.subr.mxu0 0.0
    %81 = vmatpush1.xpose.msra.mxu0 0.0
    %82 = vmatprep.subr.mxu0 0.0
    %83 = vmatpush1.xpose.msra.mxu0 0.0
    %84 = vmatprep.subr.mxu0 0.0
    %85 = vmatpush1.xpose.msra.mxu0 0.0
    %86 = vmatprep.subr.mxu0 0.0
    %87 = vmatpush1.xpose.msra.mxu0 0.0
    %88 = vmatprep.subr.mxu0 0.0
    %89 = vmatpush1.xpose.msra.mxu0 0.0
    %90 = vmatprep.subr.mxu0 0.0
    %91 = vmatpush1.xpose.msra.mxu0 0.0
    %92 = vmatprep.subr.mxu0 0.0
    %93 = vmatpush1.xpose.msra.mxu0 0.0
    %94 = vmatprep.subr.mxu0 0.0
    %95 = vmatpush1.xpose.msra.mxu0 0.0
    %96 = vmatprep.subr.mxu0 0.0
    %97 = vmatpush1.xpose.msra.mxu0 0.0
    %98 = vmatprep.subr.mxu0 0.0
    %99 = vmatpush1.xpose.msra.mxu0 0.0
    %100 = vmatprep.subr.mxu0 0.0
    %101 = vmatpush1.xpose.msra.mxu0 0.0
    %102 = vmatprep.subr.mxu0 0.0
    %103 = vmatpush1.xpose.msra.mxu0 0.0
    %104 = vmatprep.subr.mxu0 0.0
    %105 = vmatpush1.xpose.msra.mxu0 0.0
    %106 = vmatprep.subr.mxu0 0.0
    %107 = vmatpush1.xpose.msra.mxu0 0.0
    %108 = vmatprep.subr.mxu0 0.0
    %109 = vmatpush1.xpose.msra.mxu0 0.0
    %110 = vmatprep.subr.mxu0 0.0
    %111 = vmatpush1.xpose.msra.mxu0 0.0
    %112 = vmatprep.subr.mxu0 0.0
    %113 = vmatpush1.xpose.msra.mxu0 0.0
    %114 = vmatprep.subr.mxu0 0.0
    %115 = vmatpush1.xpose.msra.mxu0 0.0
    %116 = vmatprep.subr.mxu0 0.0
    %117 = vmatpush1.xpose.msra.mxu0 0.0
    %118 = vmatprep.subr.mxu0 0.0
    %119 = vmatpush1.xpose.msra.mxu0 0.0
    %120 = vmatprep.subr.mxu0 0.0
    %121 = vmatpush1.xpose.msra.mxu0 0.0
    %122 = vmatprep.subr.mxu0 0.0
    %123 = vmatpush1.xpose.msra.mxu0 0.0
    %124 = vmatprep.subr.mxu0 0.0
    %125 = vmatpush1.xpose.msra.mxu0 0.0
    %126 = vmatprep.subr.mxu0 0.0
    %127 = vmatpush1.xpose.msra.mxu0 0.0
    %128 = vmatprep.subr.mxu0 0.0
    %129 = vmatpush1.xpose.msra.mxu0 0.0
    %130 = vmatprep.subr.mxu0 0.0
    %131 = vmatpush1.xpose.msra.mxu0 0.0
    %132 = vmatprep.mubr.f32.mxu0 0.0
    %133 = vmatmul.mubr.f32.gmra.mrb[0].mxu0 %v54
    %v134 = vpop.f32.mrb[0].mxu0
    %v135 = vadd.f32 %v35, %v134
    %v136 = vpop.f32.mrb[0].mxu0
    %137 = vmatprep.mubr.f32.mxu0 0.0
    %138 = vmatmul.mubr.f32.gmra.mrb[0].mxu0 %v57
    %v139 = vpop.f32.mrb[0].mxu0
    %v140 = vadd.f32 %v40, %v139
    %v141 = vpop.f32.mrb[0].mxu0
    %142 = vmatprep.mubr.f32.mxu0 0.0
    %143 = vmatmul.mubr.f32.gmra.mrb[0].mxu0 %v60
    %v144 = vpop.f32.mrb[0].mxu0
    %v145 = vadd.f32 %v45, %v144
    %v146 = vpop.f32.mrb[0].mxu0
    %147 = vmatprep.mubr.f32.mxu0 0.0
    %148 = vmatmul.mubr.f32.gmra.mrb[0].mxu0 %v63
    %v149 = vpop.f32.mrb[0].mxu0
    %v150 = vadd.f32 %v50, %v149
    %v151 = vpop.f32.mrb[0].mxu0
    %152 = vdwg.mxu0
    %vm153 = vcmp.gt.f32.partialorder %v135, 0.0
    %vm154 = vcmp.gt.f32.partialorder %v140, 0.0
    %vm155 = vcmp.gt.f32.partialorder %v145, 0.0
    %vm156 = vcmp.gt.f32.partialorder %v150, 0.0
    %v157 = vmul.f32 %v135, 0.01
    %v158 = vmul.f32 %v140, 0.01
    %v159 = vmul.f32 %v145, 0.01
    %v160 = vmul.f32 %v150, 0.01
    %v161 = vsel %vm153, %v135, %v157
    %v162 = vsel %vm154, %v140, %v158
    %v163 = vsel %vm155, %v145, %v159
    %v164 = vsel %vm156, %v150, %v160
    %vm165 = vcmask 64512
    %v166 = vsel %vm165, %v161, 0.0
    %167 = vadd.xlane.f32.xlu0 %v166
    %v168 = vpop.xlane.xlu0 %167
    %v169 = vsel %vm165, %v162, 0.0
    %170 = vadd.xlane.f32.xlu0 %v169
    %v171 = vpop.xlane.xlu0 %170
    %v172 = vsel %vm165, %v163, 0.0
    %173 = vadd.xlane.f32.xlu0 %v172
    %v174 = vpop.xlane.xlu0 %173
    %v175 = vsel %vm165, %v164, 0.0
    %176 = vadd.xlane.f32.xlu0 %v175
    %v177 = vpop.xlane.xlu0 %176
    %v178 = vmul.f32 %v168, 0.125
    %v179 = vmul.f32 %v171, 0.125
    %v180 = vmul.f32 %v174, 0.125
    %v181 = vmul.f32 %v177, 0.125
    %v182 = vmul.f32 %v161, %v161
    %v183 = vmul.f32 %v162, %v162
    %v184 = vmul.f32 %v163, %v163
    %v185 = vmul.f32 %v164, %v164
    %v186 = vsel %vm165, %v182, 0.0
    %187 = vadd.xlane.f32.xlu0 %v186
    %v188 = vpop.xlane.xlu0 %187
    %v189 = vsel %vm165, %v183, 0.0
    %190 = vadd.xlane.f32.xlu0 %v189
    %v191 = vpop.xlane.xlu0 %190
    %v192 = vsel %vm165, %v184, 0.0
    %193 = vadd.xlane.f32.xlu0 %v192
    %v194 = vpop.xlane.xlu0 %193
    %v195 = vsel %vm165, %v185, 0.0
    %196 = vadd.xlane.f32.xlu0 %v195
    %v197 = vpop.xlane.xlu0 %196
    %v198 = vmul.f32 %v188, 0.125
    %v199 = vmul.f32 %v191, 0.125
    %v200 = vmul.f32 %v194, 0.125
    %v201 = vmul.f32 %v197, 0.125
    %v202 = vmul.f32 %v178, %v178
    %v203 = vmul.f32 %v179, %v179
    %v204 = vmul.f32 %v180, %v180
    %v205 = vmul.f32 %v181, %v181
    %v206 = vsub.f32 %v198, %v202
    %v207 = vsub.f32 %v199, %v203
    %v208 = vsub.f32 %v200, %v204
    %v209 = vsub.f32 %v201, %v205
    %v210 = vmax.f32 %v206, 0.0
    %v211 = vmax.f32 %v207, 0.0
    %v212 = vmax.f32 %v208, 0.0
    %v213 = vmax.f32 %v209, 0.0
    %v214 = vadd.f32 %v210, 1e-05
    %v215 = vadd.f32 %v211, 1e-05
    %v216 = vadd.f32 %v212, 1e-05
    %v217 = vadd.f32 %v213, 1e-05
    %v218 = vrsqrt.pop %v214
    %v219 = vrsqrt.pop %v215
    %v220 = vrsqrt.pop %v216
    %v221 = vrsqrt.pop %v217
    %v222 = vld [vmem:[%s3] sm:$0xff]
    %v223 = vld [vmem:[%s3 + $0x8] sm:$0xff]
    %v224 = vld [vmem:[%s3 + $0x10] sm:$0xff]
    %v225 = vld [vmem:[%s3 + $0x18] sm:$0xff]
    %v226 = vmul.f32 %v222, %v218
    %v227 = vmul.f32 %v223, %v219
    %v228 = vmul.f32 %v224, %v220
    %v229 = vmul.f32 %v225, %v221
    %v230 = vld [vmem:[#allocation2] sm:$0x1]
    %v231 = vmul.f32 %v226, %v178
    %v232 = vmul.f32 %v227, %v179
    %v233 = vmul.f32 %v228, %v180
    %v234 = vmul.f32 %v229, %v181
    %vm235 = vcmask 7168
    %v236 = vsel %vm235, %v231, 0.0
    %v237 = vsel %vm235, %v232, 0.0
    %v238 = vadd.f32 %v236, %v237
    %v239 = vsel %vm235, %v233, 0.0
    %v240 = vadd.f32 %v238, %v239
    %v241 = vsel %vm235, %v234, 0.0
    %v242 = vadd.f32 %v240, %v241
    %v243 = vrot.slane %v242, 4
    %v244 = vadd.f32 %v242, %v243
    %v245 = vrot.slane %v244, 2
    %v246 = vadd.f32 %v244, %v245
    %v247 = vrot.slane %v246, 1
    %v248 = vadd.f32 %v246, %v247
    %v249 = vsub.f32 %v230, %v248
    %251 = vset.pattern.permute.xlu0 0
    %252 = vperm.xlu0 %251, %v226
    %v253 = vpop.permute.xlu0 %252
    %256 = vset.pattern.permute.xlu0 0
    %257 = vperm.xlu0 %256, %v227
    %v258 = vpop.permute.xlu0 %257
    %261 = vset.pattern.permute.xlu0 0
    %262 = vperm.xlu0 %261, %v228
    %v263 = vpop.permute.xlu0 %262
    %266 = vset.pattern.permute.xlu0 0
    %267 = vperm.xlu0 %266, %v229
    %v268 = vpop.permute.xlu0 %267
    %v270 = vmul.f32 %v253, %v161
    %v271 = vmul.f32 %v258, %v162
    %v272 = vmul.f32 %v263, %v163
    %v273 = vmul.f32 %v268, %v164
    %v274 = vsel %vm165, %v270, 0.0
    %v275 = vsel %vm165, %v271, 0.0
    %v276 = vadd.f32 %v274, %v275
    %v277 = vsel %vm165, %v272, 0.0
    %v278 = vadd.f32 %v276, %v277
    %v279 = vsel %vm165, %v273, 0.0
    %v280 = vadd.f32 %v278, %v279
    %v281 = vrot.slane %v280, 4
    %v282 = vadd.f32 %v280, %v281
    %v283 = vrot.slane %v282, 2
    %v284 = vadd.f32 %v282, %v283
    %v285 = vrot.slane %v284, 1
    %v286 = vadd.f32 %v284, %v285
    %288 = vset.pattern.permute.xlu0 0
    %289 = vperm.xlu0 %288, %v249
    %v290 = vpop.permute.xlu0 %289
    %v292 = vlaneseq
    %v293 = vshrl.u32 %v292, 7
    %v294 = vsub.s32 0, %v293
    %v295 = vrot.slane %v290, %v294
    %v296 = vadd.f32 %v286, %v295
    %vm297 = vcmask 57344
    %298 = vst.msk [vmem:[#allocation3] sm:$0x1] %vm297, %v296
    // Predicated region
    $region22: #{tpu_custom_call.1} parent=1 // pred_check
      _
    $region23: #{tpu_custom_call.1} parent=1 // pred_check_branch
      %300 = sbr.rel (0) target = $region25
    $region24: #{tpu_custom_call.1} parent=1 // pred_region
      %s302 = ssub.s32 16, 16
      %303 = vsyncadd [#allocation4], %s302
      %s305 = sshll.u32 [#allocation3], 4
      %s306 = int_to_ptr.vmem [resolvable:$true] %s305
      %308 = dma.vmem_to_hbm [thread:$0]  %s306, 16, %s5, [#allocation4]
    $region25: #{tpu_custom_call.1} parent=1 // pred_fallthru
      _
    // Predicated region
    $region26: #{tpu_custom_call.1} parent=1 // pred_check
      _
    $region27: #{tpu_custom_call.1} parent=1 // pred_check_branch
      %310 = sbr.rel (0) target = $region29
    $region28: #{tpu_custom_call.1} parent=1 // pred_region
      %311 = dma.done [#allocation4], 16
    $region29: #{tpu_custom_call.1} parent=1 // pred_fallthru
      _
    %312 = vsyncpa [#allocation4], 1

</llo_original>
